<compile_context>
chip_gen: v7x
topology: tpu7x:2x2x1
jax: 0.10.0
libtpu: 0.0.40
codegen_flags: <defaults>
</compile_context>

<pallas_src>
import numpy as np

import jax
import jax.numpy as jnp
from jax.experimental import pallas as pl
from jax.experimental.pallas import tpu as pltpu


def _matmul_kernel(a_ref, b_ref, o_ref, acc_ref):
    """One (row-tile, K-tile) step of  out = A @ B  with f32 accumulation.

    A tiles may arrive as f32 (cast to bf16 on-chip, once per streamed tile);
    B tiles are already bf16.  The accumulator stays in VMEM across the K axis.
    """

    @pl.when(pl.program_id(1) == 0)
    def _init():
        acc_ref[...] = jnp.zeros_like(acc_ref)

    acc_ref[...] += jnp.dot(
        a_ref[...].astype(jnp.bfloat16),
        b_ref[...].astype(jnp.bfloat16),
        preferred_element_type=jnp.float32,
    )

    @pl.when(pl.program_id(1) == pl.num_programs(1) - 1)
    def _store():
        o_ref[...] = acc_ref[...].astype(o_ref.dtype)


def _vmem_capacity_bytes():
    """Physical VMEM per TensorCore; falls back to the v7x 64 MiB if unknown."""
    try:
        cap = getattr(pltpu.get_tpu_info(), "vmem_capacity_bytes", None)
        if cap:
            return int(cap)
    except Exception:
        pass
    return 64 * 1024 * 1024


def _pick_tile(n, target, multiples=(16, 8)):
    """Largest divisor of n that is <= target and a multiple of one entry of
    `multiples` (tried in order); falls back to the full extent, which is
    always a legal block shape."""
    if n <= target:
        return n
    for mult in multiples:
        for t in range(min(target, n), mult - 1, -1):
            if n % t == 0 and t % mult == 0:
                return t
    return n


def _tiled_matmul(a, b, out_dtype, *, tm, tk, vmem_cap):
    """out = a @ b with a:(M, K) tiled (tm, tk), b:(K, D) tiled (tk, D)."""
    M, K = a.shape
    K2, D = b.shape
    assert K == K2

    grid = (M // tm, K // tk)

    out_itemsize = np.dtype(out_dtype).itemsize
    # Streamed, double-buffered tiles + the f32 accumulator; leave 2x headroom
    # for compiler-internal scratch and never exceed ~3/4 of physical VMEM.
    est = (
        2 * tm * tk * a.dtype.itemsize        # A tiles
        + 2 * tk * D * b.dtype.itemsize       # B tiles
        + 2 * tm * D * out_itemsize           # output tiles
        + tm * D * 4                          # f32 accumulator
    )
    vmem_limit = int(min(max(2 * est, 16 * 1024 * 1024), (3 * vmem_cap) // 4))

    flops = 2 * M * K * D
    bytes_accessed = (
        a.size * a.dtype.itemsize
        + (M // tm) * b.size * b.dtype.itemsize
        + M * D * out_itemsize
    )

    return pl.pallas_call(
        _matmul_kernel,
        out_shape=jax.ShapeDtypeStruct((M, D), out_dtype),
        grid_spec=pltpu.PrefetchScalarGridSpec(
            num_scalar_prefetch=0,
            grid=grid,
            in_specs=[
                pl.BlockSpec((tm, tk), lambda i, k: (i, k)),
                pl.BlockSpec((tk, D), lambda i, k: (k, 0)),
            ],
            out_specs=pl.BlockSpec((tm, D), lambda i, k: (i, 0)),
            scratch_shapes=[pltpu.VMEM((tm, D), jnp.float32)],
        ),
        compiler_params=pltpu.CompilerParams(
            # Row tiles are independent -> megacore-parallel (2 TCs on v7x);
            # the K axis carries the accumulator -> serial.
            dimension_semantics=("parallel", "arbitrary"),
            vmem_limit_bytes=vmem_limit,
        ),
        cost_estimate=pl.CostEstimate(
            flops=flops, transcendentals=0, bytes_accessed=bytes_accessed
        ),
    )(a, b)


@jax.jit
def directed_hyper_conv_layer(pois_embs, HG_poi_src, HG_poi_tar):
    """Pallas implementation of DirectedHyperConvLayer.forward."""
    N, D = pois_embs.shape
    N_src, E = HG_poi_src.shape
    E_tar, N_tar = HG_poi_tar.shape
    assert N_src == N and N_tar == N and E_tar == E, "inconsistent input shapes"

    vmem_cap = _vmem_capacity_bytes()
    # Bigger row tiles on 128 MiB parts (v5e/v6e), tighter on 64 MiB/TC v7x.
    row_target = 512 if vmem_cap >= 96 * 1024 * 1024 else 256
    k_target = 512

    # pois_embs is re-read once per hyperedge row tile, so a single wrapper
    # bf16 cast pays for itself; the incidence matrices stay f32 in HBM and
    # are cast per streamed tile inside the kernel (each tile read only once).
    # TODO(synk): on v7x the 0..1-valued incidence matrices could use fp8
    # (e4m3) for ~2x MXU rate; not done pending precision validation.
    emb_bf16 = pois_embs.astype(jnp.bfloat16)

    # Kernel 1: msg_tar = HG_poi_tar @ pois_embs, emitted in bf16 so kernel 2
    # feeds the MXU directly (no per-step re-cast, half the intermediate bytes).
    te = _pick_tile(E, row_target, multiples=(16, 8))
    tk1 = _pick_tile(N, k_target, multiples=(128, 16, 8))
    msg_tar = _tiled_matmul(
        HG_poi_tar, emb_bf16, jnp.bfloat16, tm=te, tk=tk1, vmem_cap=vmem_cap
    )

    # Kernel 2: msg_src = HG_poi_src @ msg_tar, f32 output (torch semantics).
    tm = _pick_tile(N, row_target, multiples=(16, 8))
    tk2 = _pick_tile(E, k_target, multiples=(128, 16, 8))
    return _tiled_matmul(
        HG_poi_src, msg_tar, jnp.float32, tm=tm, tk=tk2, vmem_cap=vmem_cap
    )


if __name__ == "__main__":
    # Small synthetic problem: N = 256 POIs, E = 128 hyperedges, D = 128 dims.
    N, E, D = 256, 128, 128

    key = jax.random.PRNGKey(0)
    k_emb, k_tar, k_src, k_mtar, k_msrc = jax.random.split(key, 5)

    pois_embs = jax.random.normal(k_emb, (N, D), dtype=jnp.float32)

    # Deterministic "sparse" incidence matrices (dense storage, ~10% nonzero).
    tar_vals = jax.random.uniform(k_tar, (E, N), dtype=jnp.float32)
    tar_mask = (jax.random.uniform(k_mtar, (E, N)) < 0.1).astype(jnp.float32)
    HG_poi_tar = tar_vals * tar_mask

    src_vals = jax.random.uniform(k_src, (N, E), dtype=jnp.float32)
    src_mask = (jax.random.uniform(k_msrc, (N, E)) < 0.1).astype(jnp.float32)
    HG_poi_src = src_vals * src_mask

    out = directed_hyper_conv_layer(pois_embs, HG_poi_src, HG_poi_tar)
    out = jax.block_until_ready(out)

    # Reference mirrors the kernel's mixed precision exactly: bf16 operands,
    # f32 accumulation, and the bf16 quantization of the msg_tar intermediate,
    # so only accumulation-order / rare 1-ulp rounding differences remain.
    tarq = HG_poi_tar.astype(jnp.bfloat16).astype(jnp.float32)
    embq = pois_embs.astype(jnp.bfloat16).astype(jnp.float32)
    srcq = HG_poi_src.astype(jnp.bfloat16).astype(jnp.float32)
    msg_tar_ref = (tarq @ embq).astype(jnp.bfloat16).astype(jnp.float32)
    ref = srcq @ msg_tar_ref

    assert out.shape == (N, D)
    assert out.dtype == jnp.float32
    assert jnp.allclose(out, ref, atol=2e-2, rtol=2e-2), float(
        jnp.max(jnp.abs(out - ref))
    )

    print("KERNEL_OK")
</pallas_src>

<mosaic_0001>
module attributes {stable_mosaic.version = 11 : i64} {
  func.func @_matmul_kernel(%arg0: i32, %arg1: i32, %arg2: memref<256x128xf32, #tpu.memory_space<vmem>>, %arg3: memref<128x128xbf16, #tpu.memory_space<vmem>>, %arg4: memref<256x128xf32, #tpu.memory_space<vmem>>, %arg5: memref<256x128xf32, #tpu.memory_space<vmem>>) attributes {dimension_semantics = [#tpu.dimension_semantics<parallel>, #tpu.dimension_semantics<arbitrary>], iteration_bounds = array<i64: 1, 1>, scalar_prefetch = 0 : i64, scratch_operands = 1 : i64, tpu.core_type = #tpu.core_type<tc>, window_params = [{transform_indices = @transform_0, window_bounds = array<i64: 256, 128>}, {transform_indices = @transform_1, window_bounds = array<i64: 128, 128>}, {transform_indices = @transform_2, window_bounds = array<i64: 256, 128>}]} {
    %c0_i32 = arith.constant 0 : i32
    %0 = arith.cmpi eq, %arg1, %c0_i32 : i32
    %1 = arith.extui %0 : i1 to i32
    %c0_i32_0 = arith.constant 0 : i32
    %2 = arith.cmpi ne, %1, %c0_i32_0 : i32
    scf.if %2 {
      %cst_10 = arith.constant 0.000000e+00 : f32
      %13 = vector.broadcast %cst_10 : f32 to vector<256x128xf32>
      %c0_11 = arith.constant 0 : index
      %c0_12 = arith.constant 0 : index
      %14 = vector.load %arg5[%c0_11, %c0_12] : memref<256x128xf32, #tpu.memory_space<vmem>>, vector<256x128xf32>
      tpu.vector_store %arg5[%c0_11, %c0_12], %13 {strides = array<i32>} : memref<256x128xf32, #tpu.memory_space<vmem>>, vector<256x128xf32>,
    } else {
    }
    %c0 = arith.constant 0 : index
    %c0_1 = arith.constant 0 : index
    %3 = vector.load %arg5[%c0, %c0_1] : memref<256x128xf32, #tpu.memory_space<vmem>>, vector<256x128xf32>
    %c0_2 = arith.constant 0 : index
    %c0_3 = arith.constant 0 : index
    %4 = vector.load %arg2[%c0_2, %c0_3] : memref<256x128xf32, #tpu.memory_space<vmem>>, vector<256x128xf32>
    %5 = arith.truncf %4 : vector<256x128xf32> to vector<256x128xbf16>
    %c0_4 = arith.constant 0 : index
    %c0_5 = arith.constant 0 : index
    %6 = vector.load %arg3[%c0_4, %c0_5] : memref<128x128xbf16, #tpu.memory_space<vmem>>, vector<128x128xbf16>
    %cst = arith.constant dense<0.000000e+00> : vector<256x128xf32>
    %7 = tpu.matmul %5, %6, %cst {dimension_numbers = #tpu.dot_dimension_numbers<[1], [0], [0], [1], [0, 0, 1, 1], [], []>} : vector<256x128xbf16>, vector<128x128xbf16>, vector<256x128xf32> -> vector<256x128xf32>
    %8 = arith.addf %3, %7 : vector<256x128xf32>
    %c0_6 = arith.constant 0 : index
    %c0_7 = arith.constant 0 : index
    %9 = vector.load %arg5[%c0_6, %c0_7] : memref<256x128xf32, #tpu.memory_space<vmem>>, vector<256x128xf32>
    tpu.vector_store %arg5[%c0_6, %c0_7], %8 {strides = array<i32>} : memref<256x128xf32, #tpu.memory_space<vmem>>, vector<256x128xf32>,
    %c0_i32_8 = arith.constant 0 : i32
    %10 = arith.cmpi eq, %arg1, %c0_i32_8 : i32
    %11 = arith.extui %10 : i1 to i32
    %c0_i32_9 = arith.constant 0 : i32
    %12 = arith.cmpi ne, %11, %c0_i32_9 : i32
    scf.if %12 {
      %c0_10 = arith.constant 0 : index
      %c0_11 = arith.constant 0 : index
      %13 = vector.load %arg5[%c0_10, %c0_11] : memref<256x128xf32, #tpu.memory_space<vmem>>, vector<256x128xf32>
      %c0_12 = arith.constant 0 : index
      %c0_13 = arith.constant 0 : index
      %14 = vector.load %arg4[%c0_12, %c0_13] : memref<256x128xf32, #tpu.memory_space<vmem>>, vector<256x128xf32>
      tpu.vector_store %arg4[%c0_12, %c0_13], %13 {strides = array<i32>} : memref<256x128xf32, #tpu.memory_space<vmem>>, vector<256x128xf32>,
    } else {
    }
    return
  }
  func.func @transform_0(%arg0: i32, %arg1: i32) -> (i32, i32) {
    %c0_i32 = arith.constant 0 : i32
    return %arg0, %arg1 : i32, i32
  }
  func.func @transform_1(%arg0: i32, %arg1: i32) -> (i32, i32) {
    %c0_i32 = arith.constant 0 : i32
    %c0_i32_0 = arith.constant 0 : i32
    return %arg1, %c0_i32 : i32, i32
  }
  func.func @transform_2(%arg0: i32, %arg1: i32) -> (i32, i32) {
    %c0_i32 = arith.constant 0 : i32
    %c0_i32_0 = arith.constant 0 : i32
    return %arg0, %c0_i32 : i32, i32
  }
}

module attributes {stable_mosaic.version = 11 : i64} {
  func.func @_matmul_kernel(%arg0: i32, %arg1: i32, %arg2: memref<128x256xf32, #tpu.memory_space<vmem>>, %arg3: memref<256x128xbf16, #tpu.memory_space<vmem>>, %arg4: memref<128x128xbf16, #tpu.memory_space<vmem>>, %arg5: memref<128x128xf32, #tpu.memory_space<vmem>>) attributes {dimension_semantics = [#tpu.dimension_semantics<parallel>, #tpu.dimension_semantics<arbitrary>], iteration_bounds = array<i64: 1, 1>, scalar_prefetch = 0 : i64, scratch_operands = 1 : i64, tpu.core_type = #tpu.core_type<tc>, window_params = [{transform_indices = @transform_0, window_bounds = array<i64: 128, 256>}, {transform_indices = @transform_1, window_bounds = array<i64: 256, 128>}, {transform_indices = @transform_2, window_bounds = array<i64: 128, 128>}]} {
    %c0_i32 = arith.constant 0 : i32
    %0 = arith.cmpi eq, %arg1, %c0_i32 : i32
    %1 = arith.extui %0 : i1 to i32
    %c0_i32_0 = arith.constant 0 : i32
    %2 = arith.cmpi ne, %1, %c0_i32_0 : i32
    scf.if %2 {
      %cst_10 = arith.constant 0.000000e+00 : f32
      %13 = vector.broadcast %cst_10 : f32 to vector<128x128xf32>
      %c0_11 = arith.constant 0 : index
      %c0_12 = arith.constant 0 : index
      %14 = vector.load %arg5[%c0_11, %c0_12] : memref<128x128xf32, #tpu.memory_space<vmem>>, vector<128x128xf32>
      tpu.vector_store %arg5[%c0_11, %c0_12], %13 {strides = array<i32>} : memref<128x128xf32, #tpu.memory_space<vmem>>, vector<128x128xf32>,
    } else {
    }
    %c0 = arith.constant 0 : index
    %c0_1 = arith.constant 0 : index
    %3 = vector.load %arg5[%c0, %c0_1] : memref<128x128xf32, #tpu.memory_space<vmem>>, vector<128x128xf32>
    %c0_2 = arith.constant 0 : index
    %c0_3 = arith.constant 0 : index
    %4 = vector.load %arg2[%c0_2, %c0_3] : memref<128x256xf32, #tpu.memory_space<vmem>>, vector<128x256xf32>
    %5 = arith.truncf %4 : vector<128x256xf32> to vector<128x256xbf16>
    %c0_4 = arith.constant 0 : index
    %c0_5 = arith.constant 0 : index
    %6 = vector.load %arg3[%c0_4, %c0_5] : memref<256x128xbf16, #tpu.memory_space<vmem>>, vector<256x128xbf16>
    %cst = arith.constant dense<0.000000e+00> : vector<128x128xf32>
    %7 = tpu.matmul %5, %6, %cst {dimension_numbers = #tpu.dot_dimension_numbers<[1], [0], [0], [1], [0, 0, 1, 1], [], []>} : vector<128x256xbf16>, vector<256x128xbf16>, vector<128x128xf32> -> vector<128x128xf32>
    %8 = arith.addf %3, %7 : vector<128x128xf32>
    %c0_6 = arith.constant 0 : index
    %c0_7 = arith.constant 0 : index
    %9 = vector.load %arg5[%c0_6, %c0_7] : memref<128x128xf32, #tpu.memory_space<vmem>>, vector<128x128xf32>
    tpu.vector_store %arg5[%c0_6, %c0_7], %8 {strides = array<i32>} : memref<128x128xf32, #tpu.memory_space<vmem>>, vector<128x128xf32>,
    %c0_i32_8 = arith.constant 0 : i32
    %10 = arith.cmpi eq, %arg1, %c0_i32_8 : i32
    %11 = arith.extui %10 : i1 to i32
    %c0_i32_9 = arith.constant 0 : i32
    %12 = arith.cmpi ne, %11, %c0_i32_9 : i32
    scf.if %12 {
      %c0_10 = arith.constant 0 : index
      %c0_11 = arith.constant 0 : index
      %13 = vector.load %arg5[%c0_10, %c0_11] : memref<128x128xf32, #tpu.memory_space<vmem>>, vector<128x128xf32>
      %14 = arith.truncf %13 : vector<128x128xf32> to vector<128x128xbf16>
      %c0_12 = arith.constant 0 : index
      %c0_13 = arith.constant 0 : index
      %15 = vector.load %arg4[%c0_12, %c0_13] : memref<128x128xbf16, #tpu.memory_space<vmem>>, vector<128x128xbf16>
      tpu.vector_store %arg4[%c0_12, %c0_13], %14 {strides = array<i32>} : memref<128x128xbf16, #tpu.memory_space<vmem>>, vector<128x128xbf16>,
    } else {
    }
    return
  }
  func.func @transform_0(%arg0: i32, %arg1: i32) -> (i32, i32) {
    %c0_i32 = arith.constant 0 : i32
    return %arg0, %arg1 : i32, i32
  }
  func.func @transform_1(%arg0: i32, %arg1: i32) -> (i32, i32) {
    %c0_i32 = arith.constant 0 : i32
    %c0_i32_0 = arith.constant 0 : i32
    return %arg1, %c0_i32 : i32, i32
  }
  func.func @transform_2(%arg0: i32, %arg1: i32) -> (i32, i32) {
    %c0_i32 = arith.constant 0 : i32
    %c0_i32_0 = arith.constant 0 : i32
    return %arg0, %c0_i32 : i32, i32
  }
}

</mosaic_0001>

<llo_original>
// kernel: directed_hyper_conv_layer.2
$region0: #{directed_hyper_conv_layer.2}
  #allocation0 [shape = 'u32[]', space=smem, size = 0x4, offset = 0x4, fixed_abs, tag = 'smem constant byte address 0x4 - core index']
  #allocation1 [shape = 'u32[144,128]{1,0:T(1,128)}', space=vmem, size = 0x12000, scoped, tag = 'internal scratch']
  #allocation2 [shape = 'f32[128,128]{1,0:T(8,128)}', space=vmem, size = 0x10000, scoped, tag = 'scratch operand']
  %s0 = inlined_call_operand.vmem [shape: f32[128,256], index: 0, kind: input, shape index: {}]
  %s1 = inlined_call_operand.vmem [shape: bf16[256,128], index: 1, kind: input, shape index: {}]
  %s2 = inlined_call_operand.vmem [shape: bf16[128,128], index: 2, kind: output, shape index: {}]
  %s3 = sld [smem:[#allocation0]]
  $region26: #{directed_hyper_conv_layer.2} parent=0
    _
  %s5 = ssub.s32 1, %s3
  %s6 = scalar_select 0, %s5, %s3
  // Predicated region
  $region2: #{directed_hyper_conv_layer.2} parent=0 // pred_check
    _
  $region3: #{directed_hyper_conv_layer.2} parent=0 // pred_check_branch
    %8 = sbr.rel (0) target = $region5
  $region4: #{directed_hyper_conv_layer.2} parent=0 // pred_region
    _
  $region5: #{directed_hyper_conv_layer.2} parent=0 // pred_fallthru
    _
  // Predicated region
  $region6: #{directed_hyper_conv_layer.2} parent=0 // pred_check
    _
  $region7: #{directed_hyper_conv_layer.2} parent=0 // pred_check_branch
    %10 = sbr.rel (0) target = $region9
  $region8: #{directed_hyper_conv_layer.2} parent=0 // pred_region
    _
  $region9: #{directed_hyper_conv_layer.2} parent=0 // pred_fallthru
    _
  %p12 = scmp.eq.s32.totalorder 0, 0
  // Predicated region
  $region10: #{directed_hyper_conv_layer.2} parent=0 // pred_check
    %p13 = pneg %p12
  $region11: #{directed_hyper_conv_layer.2} parent=0 // pred_check_branch
    %15 = sbr.rel (%p13) target = $region13
  $region12: #{directed_hyper_conv_layer.2} parent=0 // pred_region
    %16 = vst [vmem:[#allocation2] sm:$0xff] 0.0
    %17 = vst [vmem:[#allocation2 + $0x8] sm:$0xff] 0.0
    %18 = vst [vmem:[#allocation2 + $0x10] sm:$0xff] 0.0
    %19 = vst [vmem:[#allocation2 + $0x18] sm:$0xff] 0.0
    %20 = vst [vmem:[#allocation2 + $0x20] sm:$0xff] 0.0
    %21 = vst [vmem:[#allocation2 + $0x28] sm:$0xff] 0.0
    %22 = vst [vmem:[#allocation2 + $0x30] sm:$0xff] 0.0
    %23 = vst [vmem:[#allocation2 + $0x38] sm:$0xff] 0.0
    %24 = vst [vmem:[#allocation2 + $0x40] sm:$0xff] 0.0
    %25 = vst [vmem:[#allocation2 + $0x48] sm:$0xff] 0.0
    %26 = vst [vmem:[#allocation2 + $0x50] sm:$0xff] 0.0
    %27 = vst [vmem:[#allocation2 + $0x58] sm:$0xff] 0.0
    %28 = vst [vmem:[#allocation2 + $0x60] sm:$0xff] 0.0
    %29 = vst [vmem:[#allocation2 + $0x68] sm:$0xff] 0.0
    %30 = vst [vmem:[#allocation2 + $0x70] sm:$0xff] 0.0
    %31 = vst [vmem:[#allocation2 + $0x78] sm:$0xff] 0.0
  $region13: #{directed_hyper_conv_layer.2} parent=0 // pred_fallthru
    _
  %v32 = vld [vmem:[#allocation2] sm:$0xff]
  %v33 = vld [vmem:[#allocation2 + $0x8] sm:$0xff]
  %v34 = vld [vmem:[#allocation2 + $0x10] sm:$0xff]
  %v35 = vld [vmem:[#allocation2 + $0x18] sm:$0xff]
  %v36 = vld [vmem:[#allocation2 + $0x20] sm:$0xff]
  %v37 = vld [vmem:[#allocation2 + $0x28] sm:$0xff]
  %v38 = vld [vmem:[#allocation2 + $0x30] sm:$0xff]
  %v39 = vld [vmem:[#allocation2 + $0x38] sm:$0xff]
  %v40 = vld [vmem:[#allocation2 + $0x40] sm:$0xff]
  %v41 = vld [vmem:[#allocation2 + $0x48] sm:$0xff]
  %v42 = vld [vmem:[#allocation2 + $0x50] sm:$0xff]
  %v43 = vld [vmem:[#allocation2 + $0x58] sm:$0xff]
  %v44 = vld [vmem:[#allocation2 + $0x60] sm:$0xff]
  %v45 = vld [vmem:[#allocation2 + $0x68] sm:$0xff]
  %v46 = vld [vmem:[#allocation2 + $0x70] sm:$0xff]
  %v47 = vld [vmem:[#allocation2 + $0x78] sm:$0xff]
  %v48 = vld [vmem:[%s0] sm:$0xff]
  %v49 = vld [vmem:[%s0 + $0x8] sm:$0xff]
  %v50 = vld [vmem:[%s0 + $0x10] sm:$0xff]
  %v51 = vld [vmem:[%s0 + $0x18] sm:$0xff]
  %v52 = vld [vmem:[%s0 + $0x20] sm:$0xff]
  %v53 = vld [vmem:[%s0 + $0x28] sm:$0xff]
  %v54 = vld [vmem:[%s0 + $0x30] sm:$0xff]
  %v55 = vld [vmem:[%s0 + $0x38] sm:$0xff]
  %v56 = vld [vmem:[%s0 + $0x40] sm:$0xff]
  %v57 = vld [vmem:[%s0 + $0x48] sm:$0xff]
  %v58 = vld [vmem:[%s0 + $0x50] sm:$0xff]
  %v59 = vld [vmem:[%s0 + $0x58] sm:$0xff]
  %v60 = vld [vmem:[%s0 + $0x60] sm:$0xff]
  %v61 = vld [vmem:[%s0 + $0x68] sm:$0xff]
  %v62 = vld [vmem:[%s0 + $0x70] sm:$0xff]
  %v63 = vld [vmem:[%s0 + $0x78] sm:$0xff]
  %v64 = vld [vmem:[%s0 + $0x80] sm:$0xff]
  %v65 = vld [vmem:[%s0 + $0x88] sm:$0xff]
  %v66 = vld [vmem:[%s0 + $0x90] sm:$0xff]
  %v67 = vld [vmem:[%s0 + $0x98] sm:$0xff]
  %v68 = vld [vmem:[%s0 + $0xa0] sm:$0xff]
  %v69 = vld [vmem:[%s0 + $0xa8] sm:$0xff]
  %v70 = vld [vmem:[%s0 + $0xb0] sm:$0xff]
  %v71 = vld [vmem:[%s0 + $0xb8] sm:$0xff]
  %v72 = vld [vmem:[%s0 + $0xc0] sm:$0xff]
  %v73 = vld [vmem:[%s0 + $0xc8] sm:$0xff]
  %v74 = vld [vmem:[%s0 + $0xd0] sm:$0xff]
  %v75 = vld [vmem:[%s0 + $0xd8] sm:$0xff]
  %v76 = vld [vmem:[%s0 + $0xe0] sm:$0xff]
  %v77 = vld [vmem:[%s0 + $0xe8] sm:$0xff]
  %v78 = vld [vmem:[%s0 + $0xf0] sm:$0xff]
  %v79 = vld [vmem:[%s0 + $0xf8] sm:$0xff]
  %v80 = vpack.c.bf16 %v50, %v48
  %v81 = vpack.c.bf16 %v51, %v49
  %v82 = vpack.c.bf16 %v54, %v52
  %v83 = vpack.c.bf16 %v55, %v53
  %v84 = vpack.c.bf16 %v58, %v56
  %v85 = vpack.c.bf16 %v59, %v57
  %v86 = vpack.c.bf16 %v62, %v60
  %v87 = vpack.c.bf16 %v63, %v61
  %v88 = vpack.c.bf16 %v66, %v64
  %v89 = vpack.c.bf16 %v67, %v65
  %v90 = vpack.c.bf16 %v70, %v68
  %v91 = vpack.c.bf16 %v71, %v69
  %v92 = vpack.c.bf16 %v74, %v72
  %v93 = vpack.c.bf16 %v75, %v73
  %v94 = vpack.c.bf16 %v78, %v76
  %v95 = vpack.c.bf16 %v79, %v77
  %v96 = vld [vmem:[%s1] sm:$0xf]
  %v97 = vld [vmem:[%s1 + $0x4] sm:$0xf]
  %v98 = vld [vmem:[%s1 + $0x8] sm:$0xf]
  %v99 = vld [vmem:[%s1 + $0xc] sm:$0xf]
  %v100 = vld [vmem:[%s1 + $0x10] sm:$0xf]
  %v101 = vld [vmem:[%s1 + $0x14] sm:$0xf]
  %v102 = vld [vmem:[%s1 + $0x18] sm:$0xf]
  %v103 = vld [vmem:[%s1 + $0x1c] sm:$0xf]
  %v104 = vld [vmem:[%s1 + $0x20] sm:$0xf]
  %v105 = vld [vmem:[%s1 + $0x24] sm:$0xf]
  %v106 = vld [vmem:[%s1 + $0x28] sm:$0xf]
  %v107 = vld [vmem:[%s1 + $0x2c] sm:$0xf]
  %v108 = vld [vmem:[%s1 + $0x30] sm:$0xf]
  %v109 = vld [vmem:[%s1 + $0x34] sm:$0xf]
  %v110 = vld [vmem:[%s1 + $0x38] sm:$0xf]
  %v111 = vld [vmem:[%s1 + $0x3c] sm:$0xf]
  %v112 = vld [vmem:[%s1 + $0x40] sm:$0xf]
  %v113 = vld [vmem:[%s1 + $0x44] sm:$0xf]
  %v114 = vld [vmem:[%s1 + $0x48] sm:$0xf]
  %v115 = vld [vmem:[%s1 + $0x4c] sm:$0xf]
  %v116 = vld [vmem:[%s1 + $0x50] sm:$0xf]
  %v117 = vld [vmem:[%s1 + $0x54] sm:$0xf]
  %v118 = vld [vmem:[%s1 + $0x58] sm:$0xf]
  %v119 = vld [vmem:[%s1 + $0x5c] sm:$0xf]
  %v120 = vld [vmem:[%s1 + $0x60] sm:$0xf]
  %v121 = vld [vmem:[%s1 + $0x64] sm:$0xf]
  %v122 = vld [vmem:[%s1 + $0x68] sm:$0xf]
  %v123 = vld [vmem:[%s1 + $0x6c] sm:$0xf]
  %v124 = vld [vmem:[%s1 + $0x70] sm:$0xf]
  %v125 = vld [vmem:[%s1 + $0x74] sm:$0xf]
  %v126 = vld [vmem:[%s1 + $0x78] sm:$0xf]
  %v127 = vld [vmem:[%s1 + $0x7c] sm:$0xf]
  %v160 = vunpack.c.l.b16 %v96
  %v161 = vunpack.c.l.b16 %v97
  %v162 = vunpack.c.l.b16 %v98
  %v163 = vunpack.c.l.b16 %v99
  %v164 = vunpack.c.l.b16 %v100
  %v165 = vunpack.c.l.b16 %v101
  %v166 = vunpack.c.l.b16 %v102
  %v167 = vunpack.c.l.b16 %v103
  %v168 = vunpack.c.l.b16 %v104
  %v169 = vunpack.c.l.b16 %v105
  %v170 = vunpack.c.l.b16 %v106
  %v171 = vunpack.c.l.b16 %v107
  %v172 = vunpack.c.l.b16 %v108
  %v173 = vunpack.c.l.b16 %v109
  %v174 = vunpack.c.l.b16 %v110
  %v175 = vunpack.c.l.b16 %v111
  %v176 = vunpack.c.l.b16 %v112
  %v177 = vunpack.c.l.b16 %v113
  %v178 = vunpack.c.l.b16 %v114
  %v179 = vunpack.c.l.b16 %v115
  %v180 = vunpack.c.l.b16 %v116
  %v181 = vunpack.c.l.b16 %v117
  %v182 = vunpack.c.l.b16 %v118
  %v183 = vunpack.c.l.b16 %v119
  %v184 = vunpack.c.l.b16 %v120
  %v185 = vunpack.c.l.b16 %v121
  %v186 = vunpack.c.l.b16 %v122
  %v187 = vunpack.c.l.b16 %v123
  %v188 = vunpack.c.l.b16 %v124
  %v189 = vunpack.c.l.b16 %v125
  %v190 = vunpack.c.l.b16 %v126
  %v191 = vunpack.c.l.b16 %v127
  %v192 = vpack.c.b16 %v161, %v160
  %v193 = vpack.c.b16 %v163, %v162
  %v194 = vpack.c.b16 %v165, %v164
  %v195 = vpack.c.b16 %v167, %v166
  %v196 = vpack.c.b16 %v169, %v168
  %v197 = vpack.c.b16 %v171, %v170
  %v198 = vpack.c.b16 %v173, %v172
  %v199 = vpack.c.b16 %v175, %v174
  %v200 = vpack.c.b16 %v177, %v176
  %v201 = vpack.c.b16 %v179, %v178
  %v202 = vpack.c.b16 %v181, %v180
  %v203 = vpack.c.b16 %v183, %v182
  %v204 = vpack.c.b16 %v185, %v184
  %v205 = vpack.c.b16 %v187, %v186
  %v206 = vpack.c.b16 %v189, %v188
  %v207 = vpack.c.b16 %v191, %v190
  %224 = vmatprep.subr.bf16.mxu0 0
  %225 = vmatpush1.bf16.msra.mxu0 %v192
  %226 = vmatprep.subr.bf16.mxu0 0
  %227 = vmatpush1.bf16.msra.mxu0 %v193
  %228 = vmatprep.subr.bf16.mxu0 0
  %229 = vmatpush1.bf16.msra.mxu0 %v194
  %230 = vmatprep.subr.bf16.mxu0 0
  %231 = vmatpush1.bf16.msra.mxu0 %v195
  %232 = vmatprep.subr.bf16.mxu0 0
  %233 = vmatpush1.bf16.msra.mxu0 %v196
  %234 = vmatprep.subr.bf16.mxu0 0
  %235 = vmatpush1.bf16.msra.mxu0 %v197
  %236 = vmatprep.subr.bf16.mxu0 0
  %237 = vmatpush1.bf16.msra.mxu0 %v198
  %238 = vmatprep.subr.bf16.mxu0 0
  %239 = vmatpush1.bf16.msra.mxu0 %v199
  %240 = vmatprep.subr.bf16.mxu0 0
  %241 = vmatpush1.bf16.msra.mxu0 %v200
  %242 = vmatprep.subr.bf16.mxu0 0
  %243 = vmatpush1.bf16.msra.mxu0 %v201
  %244 = vmatprep.subr.bf16.mxu0 0
  %245 = vmatpush1.bf16.msra.mxu0 %v202
  %246 = vmatprep.subr.bf16.mxu0 0
  %247 = vmatpush1.bf16.msra.mxu0 %v203
  %248 = vmatprep.subr.bf16.mxu0 0
  %249 = vmatpush1.bf16.msra.mxu0 %v204
  %250 = vmatprep.subr.bf16.mxu0 0
  %251 = vmatpush1.bf16.msra.mxu0 %v205
  %252 = vmatprep.subr.bf16.mxu0 0
  %253 = vmatpush1.bf16.msra.mxu0 %v206
  %254 = vmatprep.subr.bf16.mxu0 0
  %255 = vmatpush1.bf16.msra.mxu0 %v207
  %256 = vmatprep.mubr.bf16.mxu0 %v81
  %257 = vmatmul.mubr.bf16.gmra.mrb[0].mxu0 %v80
  %v258 = vpop.f32.mrb[0].mxu0
  %v259 = vadd.f32 0.0, %v258
  %v260 = vpop.f32.mrb[0].mxu0
  %v261 = vpop.f32.mrb[0].mxu0
  %v262 = vadd.f32 0.0, %v261
  %v263 = vpop.f32.mrb[0].mxu0
  %264 = vmatprep.mubr.bf16.mxu0 %v83
  %265 = vmatmul.mubr.bf16.gmra.mrb[0].mxu0 %v82
  %v266 = vpop.f32.mrb[0].mxu0
  %v267 = vadd.f32 0.0, %v266
  %v268 = vpop.f32.mrb[0].mxu0
  %v269 = vpop.f32.mrb[0].mxu0
  %v270 = vadd.f32 0.0, %v269
  %v271 = vpop.f32.mrb[0].mxu0
  %272 = vmatprep.mubr.bf16.mxu0 %v85
  %273 = vmatmul.mubr.bf16.gmra.mrb[0].mxu0 %v84
  %v274 = vpop.f32.mrb[0].mxu0
  %v275 = vadd.f32 0.0, %v274
  %v276 = vpop.f32.mrb[0].mxu0
  %v277 = vpop.f32.mrb[0].mxu0
  %v278 = vadd.f32 0.0, %v277
  %v279 = vpop.f32.mrb[0].mxu0
  %280 = vmatprep.mubr.bf16.mxu0 %v87
  %281 = vmatmul.mubr.bf16.gmra.mrb[0].mxu0 %v86
  %v282 = vpop.f32.mrb[0].mxu0
  %v283 = vadd.f32 0.0, %v282
  %v284 = vpop.f32.mrb[0].mxu0
  %v285 = vpop.f32.mrb[0].mxu0
  %v286 = vadd.f32 0.0, %v285
  %v287 = vpop.f32.mrb[0].mxu0
  %288 = vmatprep.mubr.bf16.mxu0 %v89
  %289 = vmatmul.mubr.bf16.gmra.mrb[0].mxu0 %v88
  %v290 = vpop.f32.mrb[0].mxu0
  %v291 = vadd.f32 0.0, %v290
  %v292 = vpop.f32.mrb[0].mxu0
  %v293 = vpop.f32.mrb[0].mxu0
  %v294 = vadd.f32 0.0, %v293
  %v295 = vpop.f32.mrb[0].mxu0
  %296 = vmatprep.mubr.bf16.mxu0 %v91
  %297 = vmatmul.mubr.bf16.gmra.mrb[0].mxu0 %v90
  %v298 = vpop.f32.mrb[0].mxu0
  %v299 = vadd.f32 0.0, %v298
  %v300 = vpop.f32.mrb[0].mxu0
  %v301 = vpop.f32.mrb[0].mxu0
  %v302 = vadd.f32 0.0, %v301
  %v303 = vpop.f32.mrb[0].mxu0
  %304 = vmatprep.mubr.bf16.mxu0 %v93
  %305 = vmatmul.mubr.bf16.gmra.mrb[0].mxu0 %v92
  %v306 = vpop.f32.mrb[0].mxu0
  %v307 = vadd.f32 0.0, %v306
  %v308 = vpop.f32.mrb[0].mxu0
  %v309 = vpop.f32.mrb[0].mxu0
  %v310 = vadd.f32 0.0, %v309
  %v311 = vpop.f32.mrb[0].mxu0
  %312 = vmatprep.mubr.bf16.mxu0 %v95
  %313 = vmatmul.mubr.bf16.gmra.mrb[0].mxu0 %v94
  %v314 = vpop.f32.mrb[0].mxu0
  %v315 = vadd.f32 0.0, %v314
  %v316 = vpop.f32.mrb[0].mxu0
  %v317 = vpop.f32.mrb[0].mxu0
  %v318 = vadd.f32 0.0, %v317
  %v319 = vpop.f32.mrb[0].mxu0
  %320 = vdwg.mxu0
  %v321 = vadd.f32 %v32, %v259
  %v322 = vadd.f32 %v33, %v262
  %v323 = vadd.f32 %v34, %v267
  %v324 = vadd.f32 %v35, %v270
  %v325 = vadd.f32 %v36, %v275
  %v326 = vadd.f32 %v37, %v278
  %v327 = vadd.f32 %v38, %v283
  %v328 = vadd.f32 %v39, %v286
  %v329 = vadd.f32 %v40, %v291
  %v330 = vadd.f32 %v41, %v294
  %v331 = vadd.f32 %v42, %v299
  %v332 = vadd.f32 %v43, %v302
  %v333 = vadd.f32 %v44, %v307
  %v334 = vadd.f32 %v45, %v310
  %v335 = vadd.f32 %v46, %v315
  %v336 = vadd.f32 %v47, %v318
  %337 = vst [vmem:[#allocation2] sm:$0xff] %v321
  %338 = vst [vmem:[#allocation2 + $0x8] sm:$0xff] %v322
  %339 = vst [vmem:[#allocation2 + $0x10] sm:$0xff] %v323
  %340 = vst [vmem:[#allocation2 + $0x18] sm:$0xff] %v324
  %341 = vst [vmem:[#allocation2 + $0x20] sm:$0xff] %v325
  %342 = vst [vmem:[#allocation2 + $0x28] sm:$0xff] %v326
  %343 = vst [vmem:[#allocation2 + $0x30] sm:$0xff] %v327
  %344 = vst [vmem:[#allocation2 + $0x38] sm:$0xff] %v328
  %345 = vst [vmem:[#allocation2 + $0x40] sm:$0xff] %v329
  %346 = vst [vmem:[#allocation2 + $0x48] sm:$0xff] %v330
  %347 = vst [vmem:[#allocation2 + $0x50] sm:$0xff] %v331
  %348 = vst [vmem:[#allocation2 + $0x58] sm:$0xff] %v332
  %349 = vst [vmem:[#allocation2 + $0x60] sm:$0xff] %v333
  %350 = vst [vmem:[#allocation2 + $0x68] sm:$0xff] %v334
  %351 = vst [vmem:[#allocation2 + $0x70] sm:$0xff] %v335
  %352 = vst [vmem:[#allocation2 + $0x78] sm:$0xff] %v336
  // Predicated region
  $region14: #{directed_hyper_conv_layer.2} parent=0 // pred_check
    %p353 = pneg %p12
  $region15: #{directed_hyper_conv_layer.2} parent=0 // pred_check_branch
    %355 = sbr.rel (%p353) target = $region17
  $region16: #{directed_hyper_conv_layer.2} parent=0 // pred_region
    %v356 = vld [vmem:[#allocation2] sm:$0xff]
    %v357 = vld [vmem:[#allocation2 + $0x8] sm:$0xff]
    %v358 = vld [vmem:[#allocation2 + $0x10] sm:$0xff]
    %v359 = vld [vmem:[#allocation2 + $0x18] sm:$0xff]
    %v360 = vld [vmem:[#allocation2 + $0x20] sm:$0xff]
    %v361 = vld [vmem:[#allocation2 + $0x28] sm:$0xff]
    %v362 = vld [vmem:[#allocation2 + $0x30] sm:$0xff]
    %v363 = vld [vmem:[#allocation2 + $0x38] sm:$0xff]
    %v364 = vld [vmem:[#allocation2 + $0x40] sm:$0xff]
    %v365 = vld [vmem:[#allocation2 + $0x48] sm:$0xff]
    %v366 = vld [vmem:[#allocation2 + $0x50] sm:$0xff]
    %v367 = vld [vmem:[#allocation2 + $0x58] sm:$0xff]
    %v368 = vld [vmem:[#allocation2 + $0x60] sm:$0xff]
    %v369 = vld [vmem:[#allocation2 + $0x68] sm:$0xff]
    %v370 = vld [vmem:[#allocation2 + $0x70] sm:$0xff]
    %v371 = vld [vmem:[#allocation2 + $0x78] sm:$0xff]
    %v372 = vpack.c.bf16 %v357, %v356
    %v373 = vpack.c.bf16 %v359, %v358
    %v374 = vpack.c.bf16 %v361, %v360
    %v375 = vpack.c.bf16 %v363, %v362
    %v376 = vpack.c.bf16 %v365, %v364
    %v377 = vpack.c.bf16 %v367, %v366
    %v378 = vpack.c.bf16 %v369, %v368
    %v379 = vpack.c.bf16 %v371, %v370
    %v388 = vunpack.c.l.b16 %v372
    %v389 = vunpack.c.h.b16 %v372
    %v390 = vunpack.c.l.b16 %v373
    %v391 = vunpack.c.h.b16 %v373
    %v392 = vunpack.c.l.b16 %v374
    %v393 = vunpack.c.h.b16 %v374
    %v394 = vunpack.c.l.b16 %v375
    %v395 = vunpack.c.h.b16 %v375
    %v396 = vunpack.c.l.b16 %v376
    %v397 = vunpack.c.h.b16 %v376
    %v398 = vunpack.c.l.b16 %v377
    %v399 = vunpack.c.h.b16 %v377
    %v400 = vunpack.c.l.b16 %v378
    %v401 = vunpack.c.h.b16 %v378
    %v402 = vunpack.c.l.b16 %v379
    %v403 = vunpack.c.h.b16 %v379
    %v404 = vpack.c.b16 %v388, %v388
    %v405 = vpack.c.b16 %v389, %v389
    %v406 = vpack.c.b16 %v390, %v390
    %v407 = vpack.c.b16 %v391, %v391
    %v408 = vpack.c.b16 %v392, %v392
    %v409 = vpack.c.b16 %v393, %v393
    %v410 = vpack.c.b16 %v394, %v394
    %v411 = vpack.c.b16 %v395, %v395
    %v412 = vpack.c.b16 %v396, %v396
    %v413 = vpack.c.b16 %v397, %v397
    %v414 = vpack.c.b16 %v398, %v398
    %v415 = vpack.c.b16 %v399, %v399
    %v416 = vpack.c.b16 %v400, %v400
    %v417 = vpack.c.b16 %v401, %v401
    %v418 = vpack.c.b16 %v402, %v402
    %v419 = vpack.c.b16 %v403, %v403
    %436 = vst [vmem:[%s2] sm:$0xf] %v404
    %437 = vst [vmem:[%s2 + $0x4] sm:$0xf] %v405
    %438 = vst [vmem:[%s2 + $0x8] sm:$0xf] %v406
    %439 = vst [vmem:[%s2 + $0xc] sm:$0xf] %v407
    %440 = vst [vmem:[%s2 + $0x10] sm:$0xf] %v408
    %441 = vst [vmem:[%s2 + $0x14] sm:$0xf] %v409
    %442 = vst [vmem:[%s2 + $0x18] sm:$0xf] %v410
    %443 = vst [vmem:[%s2 + $0x1c] sm:$0xf] %v411
    %444 = vst [vmem:[%s2 + $0x20] sm:$0xf] %v412
    %445 = vst [vmem:[%s2 + $0x24] sm:$0xf] %v413
    %446 = vst [vmem:[%s2 + $0x28] sm:$0xf] %v414
    %447 = vst [vmem:[%s2 + $0x2c] sm:$0xf] %v415
    %448 = vst [vmem:[%s2 + $0x30] sm:$0xf] %v416
    %449 = vst [vmem:[%s2 + $0x34] sm:$0xf] %v417
    %450 = vst [vmem:[%s2 + $0x38] sm:$0xf] %v418
    %451 = vst [vmem:[%s2 + $0x3c] sm:$0xf] %v419
  $region17: #{directed_hyper_conv_layer.2} parent=0 // pred_fallthru
    _
  // Predicated region
  $region18: #{directed_hyper_conv_layer.2} parent=0 // pred_check
    _
  $region19: #{directed_hyper_conv_layer.2} parent=0 // pred_check_branch
    %453 = sbr.rel (0) target = $region21
  $region20: #{directed_hyper_conv_layer.2} parent=0 // pred_region
    _
  $region21: #{directed_hyper_conv_layer.2} parent=0 // pred_fallthru
    _
  // Predicated region
  $region22: #{directed_hyper_conv_layer.2} parent=0 // pred_check
    _
  $region23: #{directed_hyper_conv_layer.2} parent=0 // pred_check_branch
    %455 = sbr.rel (0) target = $region25
  $region24: #{directed_hyper_conv_layer.2} parent=0 // pred_region
    _
  $region25: #{directed_hyper_conv_layer.2} parent=0 // pred_fallthru
    _

// kernel: directed_hyper_conv_layer.3
$region0: #{directed_hyper_conv_layer.3}
  #allocation0 [shape = 'u32[]', space=smem, size = 0x4, offset = 0x4, fixed_abs, tag = 'smem constant byte address 0x4 - core index']
  #allocation1 [shape = 'u32[144,128]{1,0:T(1,128)}', space=vmem, size = 0x12000, scoped, tag = 'internal scratch']
  #allocation2 [shape = 'f32[256,128]{1,0:T(8,128)}', space=vmem, size = 0x20000, scoped, tag = 'scratch operand']
  %s0 = inlined_call_operand.vmem [shape: f32[256,128], index: 0, kind: input, shape index: {}]
  %s1 = inlined_call_operand.vmem [shape: bf16[128,128], index: 1, kind: input, shape index: {}]
  %s2 = inlined_call_operand.hbm [shape: f32[256,128], index: 2, kind: output, shape index: {}]
  %s3 = sld [smem:[#allocation0]]
  $region26: #{directed_hyper_conv_layer.3} parent=0
    _
  %s5 = ssub.s32 1, %s3
  %s6 = scalar_select 0, %s5, %s3
  $region1: #{directed_hyper_conv_layer.3} parent=0
    #allocation3 [shape = 'u8[131072]{0}', space=vmem, size = 0x20000, scoped, tag = 'output window, operand 0, single buffered']
    #allocation4 [shape = 's32[1]{0}', space=sflag, size = 0x4, scoped, tag = 'scoped memory for directed_hyper_conv_layer.3']
    %7 = vsyncpa [#allocation4], 0
    // Predicated region
    $region2: #{directed_hyper_conv_layer.3} parent=1 // pred_check
      _
    $region3: #{directed_hyper_conv_layer.3} parent=1 // pred_check_branch
      %9 = sbr.rel (0) target = $region5
    $region4: #{directed_hyper_conv_layer.3} parent=1 // pred_region
      _
    $region5: #{directed_hyper_conv_layer.3} parent=1 // pred_fallthru
      _
    // Predicated region
    $region6: #{directed_hyper_conv_layer.3} parent=1 // pred_check
      _
    $region7: #{directed_hyper_conv_layer.3} parent=1 // pred_check_branch
      %11 = sbr.rel (0) target = $region9
    $region8: #{directed_hyper_conv_layer.3} parent=1 // pred_region
      _
    $region9: #{directed_hyper_conv_layer.3} parent=1 // pred_fallthru
      _
    %p13 = scmp.eq.s32.totalorder 0, 0
    // Predicated region
    $region10: #{directed_hyper_conv_layer.3} parent=1 // pred_check
      %p14 = pneg %p13
    $region11: #{directed_hyper_conv_layer.3} parent=1 // pred_check_branch
      %16 = sbr.rel (%p14) target = $region13
    $region12: #{directed_hyper_conv_layer.3} parent=1 // pred_region
      %17 = vst [vmem:[#allocation2] sm:$0xff] 0.0
      %18 = vst [vmem:[#allocation2 + $0x8] sm:$0xff] 0.0
      %19 = vst [vmem:[#allocation2 + $0x10] sm:$0xff] 0.0
      %20 = vst [vmem:[#allocation2 + $0x18] sm:$0xff] 0.0
      %21 = vst [vmem:[#allocation2 + $0x20] sm:$0xff] 0.0
      %22 = vst [vmem:[#allocation2 + $0x28] sm:$0xff] 0.0
      %23 = vst [vmem:[#allocation2 + $0x30] sm:$0xff] 0.0
      %24 = vst [vmem:[#allocation2 + $0x38] sm:$0xff] 0.0
      %25 = vst [vmem:[#allocation2 + $0x40] sm:$0xff] 0.0
      %26 = vst [vmem:[#allocation2 + $0x48] sm:$0xff] 0.0
      %27 = vst [vmem:[#allocation2 + $0x50] sm:$0xff] 0.0
      %28 = vst [vmem:[#allocation2 + $0x58] sm:$0xff] 0.0
      %29 = vst [vmem:[#allocation2 + $0x60] sm:$0xff] 0.0
      %30 = vst [vmem:[#allocation2 + $0x68] sm:$0xff] 0.0
      %31 = vst [vmem:[#allocation2 + $0x70] sm:$0xff] 0.0
      %32 = vst [vmem:[#allocation2 + $0x78] sm:$0xff] 0.0
      %33 = vst [vmem:[#allocation2 + $0x80] sm:$0xff] 0.0
      %34 = vst [vmem:[#allocation2 + $0x88] sm:$0xff] 0.0
      %35 = vst [vmem:[#allocation2 + $0x90] sm:$0xff] 0.0
      %36 = vst [vmem:[#allocation2 + $0x98] sm:$0xff] 0.0
      %37 = vst [vmem:[#allocation2 + $0xa0] sm:$0xff] 0.0
      %38 = vst [vmem:[#allocation2 + $0xa8] sm:$0xff] 0.0
      %39 = vst [vmem:[#allocation2 + $0xb0] sm:$0xff] 0.0
      %40 = vst [vmem:[#allocation2 + $0xb8] sm:$0xff] 0.0
      %41 = vst [vmem:[#allocation2 + $0xc0] sm:$0xff] 0.0
      %42 = vst [vmem:[#allocation2 + $0xc8] sm:$0xff] 0.0
      %43 = vst [vmem:[#allocation2 + $0xd0] sm:$0xff] 0.0
      %44 = vst [vmem:[#allocation2 + $0xd8] sm:$0xff] 0.0
      %45 = vst [vmem:[#allocation2 + $0xe0] sm:$0xff] 0.0
      %46 = vst [vmem:[#allocation2 + $0xe8] sm:$0xff] 0.0
      %47 = vst [vmem:[#allocation2 + $0xf0] sm:$0xff] 0.0
      %48 = vst [vmem:[#allocation2 + $0xf8] sm:$0xff] 0.0
    $region13: #{directed_hyper_conv_layer.3} parent=1 // pred_fallthru
      _
    %v49 = vld [vmem:[#allocation2] sm:$0xff]
    %v50 = vld [vmem:[#allocation2 + $0x8] sm:$0xff]
    %v51 = vld [vmem:[#allocation2 + $0x10] sm:$0xff]
    %v52 = vld [vmem:[#allocation2 + $0x18] sm:$0xff]
    %v53 = vld [vmem:[#allocation2 + $0x20] sm:$0xff]
    %v54 = vld [vmem:[#allocation2 + $0x28] sm:$0xff]
    %v55 = vld [vmem:[#allocation2 + $0x30] sm:$0xff]
    %v56 = vld [vmem:[#allocation2 + $0x38] sm:$0xff]
    %v57 = vld [vmem:[#allocation2 + $0x40] sm:$0xff]
    %v58 = vld [vmem:[#allocation2 + $0x48] sm:$0xff]
    %v59 = vld [vmem:[#allocation2 + $0x50] sm:$0xff]
    %v60 = vld [vmem:[#allocation2 + $0x58] sm:$0xff]
    %v61 = vld [vmem:[#allocation2 + $0x60] sm:$0xff]
    %v62 = vld [vmem:[#allocation2 + $0x68] sm:$0xff]
    %v63 = vld [vmem:[#allocation2 + $0x70] sm:$0xff]
    %v64 = vld [vmem:[#allocation2 + $0x78] sm:$0xff]
    %v65 = vld [vmem:[#allocation2 + $0x80] sm:$0xff]
    %v66 = vld [vmem:[#allocation2 + $0x88] sm:$0xff]
    %v67 = vld [vmem:[#allocation2 + $0x90] sm:$0xff]
    %v68 = vld [vmem:[#allocation2 + $0x98] sm:$0xff]
    %v69 = vld [vmem:[#allocation2 + $0xa0] sm:$0xff]
    %v70 = vld [vmem:[#allocation2 + $0xa8] sm:$0xff]
    %v71 = vld [vmem:[#allocation2 + $0xb0] sm:$0xff]
    %v72 = vld [vmem:[#allocation2 + $0xb8] sm:$0xff]
    %v73 = vld [vmem:[#allocation2 + $0xc0] sm:$0xff]
    %v74 = vld [vmem:[#allocation2 + $0xc8] sm:$0xff]
    %v75 = vld [vmem:[#allocation2 + $0xd0] sm:$0xff]
    %v76 = vld [vmem:[#allocation2 + $0xd8] sm:$0xff]
    %v77 = vld [vmem:[#allocation2 + $0xe0] sm:$0xff]
    %v78 = vld [vmem:[#allocation2 + $0xe8] sm:$0xff]
    %v79 = vld [vmem:[#allocation2 + $0xf0] sm:$0xff]
    %v80 = vld [vmem:[#allocation2 + $0xf8] sm:$0xff]
    %v81 = vld [vmem:[%s0] sm:$0xff]
    %v82 = vld [vmem:[%s0 + $0x8] sm:$0xff]
    %v83 = vld [vmem:[%s0 + $0x10] sm:$0xff]
    %v84 = vld [vmem:[%s0 + $0x18] sm:$0xff]
    %v85 = vld [vmem:[%s0 + $0x20] sm:$0xff]
    %v86 = vld [vmem:[%s0 + $0x28] sm:$0xff]
    %v87 = vld [vmem:[%s0 + $0x30] sm:$0xff]
    %v88 = vld [vmem:[%s0 + $0x38] sm:$0xff]
    %v89 = vld [vmem:[%s0 + $0x40] sm:$0xff]
    %v90 = vld [vmem:[%s0 + $0x48] sm:$0xff]
    %v91 = vld [vmem:[%s0 + $0x50] sm:$0xff]
    %v92 = vld [vmem:[%s0 + $0x58] sm:$0xff]
    %v93 = vld [vmem:[%s0 + $0x60] sm:$0xff]
    %v94 = vld [vmem:[%s0 + $0x68] sm:$0xff]
    %v95 = vld [vmem:[%s0 + $0x70] sm:$0xff]
    %v96 = vld [vmem:[%s0 + $0x78] sm:$0xff]
    %v97 = vld [vmem:[%s0 + $0x80] sm:$0xff]
    %v98 = vld [vmem:[%s0 + $0x88] sm:$0xff]
    %v99 = vld [vmem:[%s0 + $0x90] sm:$0xff]
    %v100 = vld [vmem:[%s0 + $0x98] sm:$0xff]
    %v101 = vld [vmem:[%s0 + $0xa0] sm:$0xff]
    %v102 = vld [vmem:[%s0 + $0xa8] sm:$0xff]
    %v103 = vld [vmem:[%s0 + $0xb0] sm:$0xff]
    %v104 = vld [vmem:[%s0 + $0xb8] sm:$0xff]
    %v105 = vld [vmem:[%s0 + $0xc0] sm:$0xff]
    %v106 = vld [vmem:[%s0 + $0xc8] sm:$0xff]
    %v107 = vld [vmem:[%s0 + $0xd0] sm:$0xff]
    %v108 = vld [vmem:[%s0 + $0xd8] sm:$0xff]
    %v109 = vld [vmem:[%s0 + $0xe0] sm:$0xff]
    %v110 = vld [vmem:[%s0 + $0xe8] sm:$0xff]
    %v111 = vld [vmem:[%s0 + $0xf0] sm:$0xff]
    %v112 = vld [vmem:[%s0 + $0xf8] sm:$0xff]
    %v113 = vpack.c.bf16 %v82, %v81
    %v114 = vpack.c.bf16 %v84, %v83
    %v115 = vpack.c.bf16 %v86, %v85
    %v116 = vpack.c.bf16 %v88, %v87
    %v117 = vpack.c.bf16 %v90, %v89
    %v118 = vpack.c.bf16 %v92, %v91
    %v119 = vpack.c.bf16 %v94, %v93
    %v120 = vpack.c.bf16 %v96, %v95
    %v121 = vpack.c.bf16 %v98, %v97
    %v122 = vpack.c.bf16 %v100, %v99
    %v123 = vpack.c.bf16 %v102, %v101
    %v124 = vpack.c.bf16 %v104, %v103
    %v125 = vpack.c.bf16 %v106, %v105
    %v126 = vpack.c.bf16 %v108, %v107
    %v127 = vpack.c.bf16 %v110, %v109
    %v128 = vpack.c.bf16 %v112, %v111
    %v129 = vld [vmem:[%s1] sm:$0xf]
    %v130 = vld [vmem:[%s1 + $0x4] sm:$0xf]
    %v131 = vld [vmem:[%s1 + $0x8] sm:$0xf]
    %v132 = vld [vmem:[%s1 + $0xc] sm:$0xf]
    %v133 = vld [vmem:[%s1 + $0x10] sm:$0xf]
    %v134 = vld [vmem:[%s1 + $0x14] sm:$0xf]
    %v135 = vld [vmem:[%s1 + $0x18] sm:$0xf]
    %v136 = vld [vmem:[%s1 + $0x1c] sm:$0xf]
    %v137 = vld [vmem:[%s1 + $0x20] sm:$0xf]
    %v138 = vld [vmem:[%s1 + $0x24] sm:$0xf]
    %v139 = vld [vmem:[%s1 + $0x28] sm:$0xf]
    %v140 = vld [vmem:[%s1 + $0x2c] sm:$0xf]
    %v141 = vld [vmem:[%s1 + $0x30] sm:$0xf]
    %v142 = vld [vmem:[%s1 + $0x34] sm:$0xf]
    %v143 = vld [vmem:[%s1 + $0x38] sm:$0xf]
    %v144 = vld [vmem:[%s1 + $0x3c] sm:$0xf]
    %v161 = vunpack.c.l.b16 %v129
    %v162 = vunpack.c.l.b16 %v130
    %v163 = vunpack.c.l.b16 %v131
    %v164 = vunpack.c.l.b16 %v132
    %v165 = vunpack.c.l.b16 %v133
    %v166 = vunpack.c.l.b16 %v134
    %v167 = vunpack.c.l.b16 %v135
    %v168 = vunpack.c.l.b16 %v136
    %v169 = vunpack.c.l.b16 %v137
    %v170 = vunpack.c.l.b16 %v138
    %v171 = vunpack.c.l.b16 %v139
    %v172 = vunpack.c.l.b16 %v140
    %v173 = vunpack.c.l.b16 %v141
    %v174 = vunpack.c.l.b16 %v142
    %v175 = vunpack.c.l.b16 %v143
    %v176 = vunpack.c.l.b16 %v144
    %v177 = vpack.c.b16 %v162, %v161
    %v178 = vpack.c.b16 %v164, %v163
    %v179 = vpack.c.b16 %v166, %v165
    %v180 = vpack.c.b16 %v168, %v167
    %v181 = vpack.c.b16 %v170, %v169
    %v182 = vpack.c.b16 %v172, %v171
    %v183 = vpack.c.b16 %v174, %v173
    %v184 = vpack.c.b16 %v176, %v175
    %193 = vmatprep.subr.bf16.mxu0 0
    %194 = vmatpush1.bf16.msra.mxu0 %v177
    %195 = vmatprep.subr.bf16.mxu0 0
    %196 = vmatpush1.bf16.msra.mxu0 %v178
    %197 = vmatprep.subr.bf16.mxu0 0
    %198 = vmatpush1.bf16.msra.mxu0 %v179
    %199 = vmatprep.subr.bf16.mxu0 0
    %200 = vmatpush1.bf16.msra.mxu0 %v180
    %201 = vmatprep.subr.bf16.mxu0 0
    %202 = vmatpush1.bf16.msra.mxu0 %v181
    %203 = vmatprep.subr.bf16.mxu0 0
    %204 = vmatpush1.bf16.msra.mxu0 %v182
    %205 = vmatprep.subr.bf16.mxu0 0
    %206 = vmatpush1.bf16.msra.mxu0 %v183
    %207 = vmatprep.subr.bf16.mxu0 0
    %208 = vmatpush1.bf16.msra.mxu0 %v184
    %209 = vmatprep.subr.bf16.mxu0 0
    %210 = vmatpush1.bf16.msra.mxu0 0
    %211 = vmatprep.subr.bf16.mxu0 0
    %212 = vmatpush1.bf16.msra.mxu0 0
    %213 = vmatprep.subr.bf16.mxu0 0
    %214 = vmatpush1.bf16.msra.mxu0 0
    %215 = vmatprep.subr.bf16.mxu0 0
    %216 = vmatpush1.bf16.msra.mxu0 0
    %217 = vmatprep.subr.bf16.mxu0 0
    %218 = vmatpush1.bf16.msra.mxu0 0
    %219 = vmatprep.subr.bf16.mxu0 0
    %220 = vmatpush1.bf16.msra.mxu0 0
    %221 = vmatprep.subr.bf16.mxu0 0
    %222 = vmatpush1.bf16.msra.mxu0 0
    %223 = vmatprep.subr.bf16.mxu0 0
    %224 = vmatpush1.bf16.msra.mxu0 0
    %225 = vmatprep.mubr.bf16.mxu0 0
    %226 = vmatmul.mubr.bf16.gmra.mrb[0].mxu0 %v113
    %v227 = vpop.f32.mrb[0].mxu0
    %v228 = vadd.f32 0.0, %v227
    %v229 = vpop.f32.mrb[0].mxu0
    %v230 = vpop.f32.mrb[0].mxu0
    %v231 = vadd.f32 0.0, %v230
    %v232 = vpop.f32.mrb[0].mxu0
    %233 = vmatprep.mubr.bf16.mxu0 0
    %234 = vmatmul.mubr.bf16.gmra.mrb[0].mxu0 %v114
    %v235 = vpop.f32.mrb[0].mxu0
    %v236 = vadd.f32 0.0, %v235
    %v237 = vpop.f32.mrb[0].mxu0
    %v238 = vpop.f32.mrb[0].mxu0
    %v239 = vadd.f32 0.0, %v238
    %v240 = vpop.f32.mrb[0].mxu0
    %241 = vmatprep.mubr.bf16.mxu0 0
    %242 = vmatmul.mubr.bf16.gmra.mrb[0].mxu0 %v115
    %v243 = vpop.f32.mrb[0].mxu0
    %v244 = vadd.f32 0.0, %v243
    %v245 = vpop.f32.mrb[0].mxu0
    %v246 = vpop.f32.mrb[0].mxu0
    %v247 = vadd.f32 0.0, %v246
    %v248 = vpop.f32.mrb[0].mxu0
    %249 = vmatprep.mubr.bf16.mxu0 0
    %250 = vmatmul.mubr.bf16.gmra.mrb[0].mxu0 %v116
    %v251 = vpop.f32.mrb[0].mxu0
    %v252 = vadd.f32 0.0, %v251
    %v253 = vpop.f32.mrb[0].mxu0
    %v254 = vpop.f32.mrb[0].mxu0
    %v255 = vadd.f32 0.0, %v254
    %v256 = vpop.f32.mrb[0].mxu0
    %257 = vmatprep.mubr.bf16.mxu0 0
    %258 = vmatmul.mubr.bf16.gmra.mrb[0].mxu0 %v117
    %v259 = vpop.f32.mrb[0].mxu0
    %v260 = vadd.f32 0.0, %v259
    %v261 = vpop.f32.mrb[0].mxu0
    %v262 = vpop.f32.mrb[0].mxu0
    %v263 = vadd.f32 0.0, %v262
    %v264 = vpop.f32.mrb[0].mxu0
    %265 = vmatprep.mubr.bf16.mxu0 0
    %266 = vmatmul.mubr.bf16.gmra.mrb[0].mxu0 %v118
    %v267 = vpop.f32.mrb[0].mxu0
    %v268 = vadd.f32 0.0, %v267
    %v269 = vpop.f32.mrb[0].mxu0
    %v270 = vpop.f32.mrb[0].mxu0
    %v271 = vadd.f32 0.0, %v270
    %v272 = vpop.f32.mrb[0].mxu0
    %273 = vmatprep.mubr.bf16.mxu0 0
    %274 = vmatmul.mubr.bf16.gmra.mrb[0].mxu0 %v119
    %v275 = vpop.f32.mrb[0].mxu0
    %v276 = vadd.f32 0.0, %v275
    %v277 = vpop.f32.mrb[0].mxu0
    %v278 = vpop.f32.mrb[0].mxu0
    %v279 = vadd.f32 0.0, %v278
    %v280 = vpop.f32.mrb[0].mxu0
    %281 = vmatprep.mubr.bf16.mxu0 0
    %282 = vmatmul.mubr.bf16.gmra.mrb[0].mxu0 %v120
    %v283 = vpop.f32.mrb[0].mxu0
    %v284 = vadd.f32 0.0, %v283
    %v285 = vpop.f32.mrb[0].mxu0
    %v286 = vpop.f32.mrb[0].mxu0
    %v287 = vadd.f32 0.0, %v286
    %v288 = vpop.f32.mrb[0].mxu0
    %289 = vmatprep.mubr.bf16.mxu0 0
    %290 = vmatmul.mubr.bf16.gmra.mrb[0].mxu0 %v121
    %v291 = vpop.f32.mrb[0].mxu0
    %v292 = vadd.f32 0.0, %v291
    %v293 = vpop.f32.mrb[0].mxu0
    %v294 = vpop.f32.mrb[0].mxu0
    %v295 = vadd.f32 0.0, %v294
    %v296 = vpop.f32.mrb[0].mxu0
    %297 = vmatprep.mubr.bf16.mxu0 0
    %298 = vmatmul.mubr.bf16.gmra.mrb[0].mxu0 %v122
    %v299 = vpop.f32.mrb[0].mxu0
    %v300 = vadd.f32 0.0, %v299
    %v301 = vpop.f32.mrb[0].mxu0
    %v302 = vpop.f32.mrb[0].mxu0
    %v303 = vadd.f32 0.0, %v302
    %v304 = vpop.f32.mrb[0].mxu0
    %305 = vmatprep.mubr.bf16.mxu0 0
    %306 = vmatmul.mubr.bf16.gmra.mrb[0].mxu0 %v123
    %v307 = vpop.f32.mrb[0].mxu0
    %v308 = vadd.f32 0.0, %v307
    %v309 = vpop.f32.mrb[0].mxu0
    %v310 = vpop.f32.mrb[0].mxu0
    %v311 = vadd.f32 0.0, %v310
    %v312 = vpop.f32.mrb[0].mxu0
    %313 = vmatprep.mubr.bf16.mxu0 0
    %314 = vmatmul.mubr.bf16.gmra.mrb[0].mxu0 %v124
    %v315 = vpop.f32.mrb[0].mxu0
    %v316 = vadd.f32 0.0, %v315
    %v317 = vpop.f32.mrb[0].mxu0
    %v318 = vpop.f32.mrb[0].mxu0
    %v319 = vadd.f32 0.0, %v318
    %v320 = vpop.f32.mrb[0].mxu0
    %321 = vmatprep.mubr.bf16.mxu0 0
    %322 = vmatmul.mubr.bf16.gmra.mrb[0].mxu0 %v125
    %v323 = vpop.f32.mrb[0].mxu0
    %v324 = vadd.f32 0.0, %v323
    %v325 = vpop.f32.mrb[0].mxu0
    %v326 = vpop.f32.mrb[0].mxu0
    %v327 = vadd.f32 0.0, %v326
    %v328 = vpop.f32.mrb[0].mxu0
    %329 = vmatprep.mubr.bf16.mxu0 0
    %330 = vmatmul.mubr.bf16.gmra.mrb[0].mxu0 %v126
    %v331 = vpop.f32.mrb[0].mxu0
    %v332 = vadd.f32 0.0, %v331
    %v333 = vpop.f32.mrb[0].mxu0
    %v334 = vpop.f32.mrb[0].mxu0
    %v335 = vadd.f32 0.0, %v334
    %v336 = vpop.f32.mrb[0].mxu0
    %337 = vmatprep.mubr.bf16.mxu0 0
    %338 = vmatmul.mubr.bf16.gmra.mrb[0].mxu0 %v127
    %v339 = vpop.f32.mrb[0].mxu0
    %v340 = vadd.f32 0.0, %v339
    %v341 = vpop.f32.mrb[0].mxu0
    %v342 = vpop.f32.mrb[0].mxu0
    %v343 = vadd.f32 0.0, %v342
    %v344 = vpop.f32.mrb[0].mxu0
    %345 = vmatprep.mubr.bf16.mxu0 0
    %346 = vmatmul.mubr.bf16.gmra.mrb[0].mxu0 %v128
    %v347 = vpop.f32.mrb[0].mxu0
    %v348 = vadd.f32 0.0, %v347
    %v349 = vpop.f32.mrb[0].mxu0
    %v350 = vpop.f32.mrb[0].mxu0
    %v351 = vadd.f32 0.0, %v350
    %v352 = vpop.f32.mrb[0].mxu0
    %353 = vdwg.mxu0
    %v354 = vadd.f32 %v49, %v228
    %v355 = vadd.f32 %v50, %v231
    %v356 = vadd.f32 %v51, %v236
    %v357 = vadd.f32 %v52, %v239
    %v358 = vadd.f32 %v53, %v244
    %v359 = vadd.f32 %v54, %v247
    %v360 = vadd.f32 %v55, %v252
    %v361 = vadd.f32 %v56, %v255
    %v362 = vadd.f32 %v57, %v260
    %v363 = vadd.f32 %v58, %v263
    %v364 = vadd.f32 %v59, %v268
    %v365 = vadd.f32 %v60, %v271
    %v366 = vadd.f32 %v61, %v276
    %v367 = vadd.f32 %v62, %v279
    %v368 = vadd.f32 %v63, %v284
    %v369 = vadd.f32 %v64, %v287
    %v370 = vadd.f32 %v65, %v292
    %v371 = vadd.f32 %v66, %v295
    %v372 = vadd.f32 %v67, %v300
    %v373 = vadd.f32 %v68, %v303
    %v374 = vadd.f32 %v69, %v308
    %v375 = vadd.f32 %v70, %v311
    %v376 = vadd.f32 %v71, %v316
    %v377 = vadd.f32 %v72, %v319
    %v378 = vadd.f32 %v73, %v324
    %v379 = vadd.f32 %v74, %v327
    %v380 = vadd.f32 %v75, %v332
    %v381 = vadd.f32 %v76, %v335
    %v382 = vadd.f32 %v77, %v340
    %v383 = vadd.f32 %v78, %v343
    %v384 = vadd.f32 %v79, %v348
    %v385 = vadd.f32 %v80, %v351
    %386 = vst [vmem:[#allocation2] sm:$0xff] %v354
    %387 = vst [vmem:[#allocation2 + $0x8] sm:$0xff] %v355
    %388 = vst [vmem:[#allocation2 + $0x10] sm:$0xff] %v356
    %389 = vst [vmem:[#allocation2 + $0x18] sm:$0xff] %v357
    %390 = vst [vmem:[#allocation2 + $0x20] sm:$0xff] %v358
    %391 = vst [vmem:[#allocation2 + $0x28] sm:$0xff] %v359
    %392 = vst [vmem:[#allocation2 + $0x30] sm:$0xff] %v360
    %393 = vst [vmem:[#allocation2 + $0x38] sm:$0xff] %v361
    %394 = vst [vmem:[#allocation2 + $0x40] sm:$0xff] %v362
    %395 = vst [vmem:[#allocation2 + $0x48] sm:$0xff] %v363
    %396 = vst [vmem:[#allocation2 + $0x50] sm:$0xff] %v364
    %397 = vst [vmem:[#allocation2 + $0x58] sm:$0xff] %v365
    %398 = vst [vmem:[#allocation2 + $0x60] sm:$0xff] %v366
    %399 = vst [vmem:[#allocation2 + $0x68] sm:$0xff] %v367
    %400 = vst [vmem:[#allocation2 + $0x70] sm:$0xff] %v368
    %401 = vst [vmem:[#allocation2 + $0x78] sm:$0xff] %v369
    %402 = vst [vmem:[#allocation2 + $0x80] sm:$0xff] %v370
    %403 = vst [vmem:[#allocation2 + $0x88] sm:$0xff] %v371
    %404 = vst [vmem:[#allocation2 + $0x90] sm:$0xff] %v372
    %405 = vst [vmem:[#allocation2 + $0x98] sm:$0xff] %v373
    %406 = vst [vmem:[#allocation2 + $0xa0] sm:$0xff] %v374
    %407 = vst [vmem:[#allocation2 + $0xa8] sm:$0xff] %v375
    %408 = vst [vmem:[#allocation2 + $0xb0] sm:$0xff] %v376
    %409 = vst [vmem:[#allocation2 + $0xb8] sm:$0xff] %v377
    %410 = vst [vmem:[#allocation2 + $0xc0] sm:$0xff] %v378
    %411 = vst [vmem:[#allocation2 + $0xc8] sm:$0xff] %v379
    %412 = vst [vmem:[#allocation2 + $0xd0] sm:$0xff] %v380
    %413 = vst [vmem:[#allocation2 + $0xd8] sm:$0xff] %v381
    %414 = vst [vmem:[#allocation2 + $0xe0] sm:$0xff] %v382
    %415 = vst [vmem:[#allocation2 + $0xe8] sm:$0xff] %v383
    %416 = vst [vmem:[#allocation2 + $0xf0] sm:$0xff] %v384
    %417 = vst [vmem:[#allocation2 + $0xf8] sm:$0xff] %v385
    // Predicated region
    $region14: #{directed_hyper_conv_layer.3} parent=1 // pred_check
      %p418 = pneg %p13
    $region15: #{directed_hyper_conv_layer.3} parent=1 // pred_check_branch
      %420 = sbr.rel (%p418) target = $region17
    $region16: #{directed_hyper_conv_layer.3} parent=1 // pred_region
      %v421 = vld [vmem:[#allocation2] sm:$0xff]
      %v422 = vld [vmem:[#allocation2 + $0x8] sm:$0xff]
      %v423 = vld [vmem:[#allocation2 + $0x10] sm:$0xff]
      %v424 = vld [vmem:[#allocation2 + $0x18] sm:$0xff]
      %v425 = vld [vmem:[#allocation2 + $0x20] sm:$0xff]
      %v426 = vld [vmem:[#allocation2 + $0x28] sm:$0xff]
      %v427 = vld [vmem:[#allocation2 + $0x30] sm:$0xff]
      %v428 = vld [vmem:[#allocation2 + $0x38] sm:$0xff]
      %v429 = vld [vmem:[#allocation2 + $0x40] sm:$0xff]
      %v430 = vld [vmem:[#allocation2 + $0x48] sm:$0xff]
      %v431 = vld [vmem:[#allocation2 + $0x50] sm:$0xff]
      %v432 = vld [vmem:[#allocation2 + $0x58] sm:$0xff]
      %v433 = vld [vmem:[#allocation2 + $0x60] sm:$0xff]
      %v434 = vld [vmem:[#allocation2 + $0x68] sm:$0xff]
      %v435 = vld [vmem:[#allocation2 + $0x70] sm:$0xff]
      %v436 = vld [vmem:[#allocation2 + $0x78] sm:$0xff]
      %v437 = vld [vmem:[#allocation2 + $0x80] sm:$0xff]
      %v438 = vld [vmem:[#allocation2 + $0x88] sm:$0xff]
      %v439 = vld [vmem:[#allocation2 + $0x90] sm:$0xff]
      %v440 = vld [vmem:[#allocation2 + $0x98] sm:$0xff]
      %v441 = vld [vmem:[#allocation2 + $0xa0] sm:$0xff]
      %v442 = vld [vmem:[#allocation2 + $0xa8] sm:$0xff]
      %v443 = vld [vmem:[#allocation2 + $0xb0] sm:$0xff]
      %v444 = vld [vmem:[#allocation2 + $0xb8] sm:$0xff]
      %v445 = vld [vmem:[#allocation2 + $0xc0] sm:$0xff]
      %v446 = vld [vmem:[#allocation2 + $0xc8] sm:$0xff]
      %v447 = vld [vmem:[#allocation2 + $0xd0] sm:$0xff]
      %v448 = vld [vmem:[#allocation2 + $0xd8] sm:$0xff]
      %v449 = vld [vmem:[#allocation2 + $0xe0] sm:$0xff]
      %v450 = vld [vmem:[#allocation2 + $0xe8] sm:$0xff]
      %v451 = vld [vmem:[#allocation2 + $0xf0] sm:$0xff]
      %v452 = vld [vmem:[#allocation2 + $0xf8] sm:$0xff]
      %453 = vst [vmem:[#allocation3] sm:$0xff] %v421
      %454 = vst [vmem:[#allocation3 + $0x8] sm:$0xff] %v422
      %455 = vst [vmem:[#allocation3 + $0x10] sm:$0xff] %v423
      %456 = vst [vmem:[#allocation3 + $0x18] sm:$0xff] %v424
      %457 = vst [vmem:[#allocation3 + $0x20] sm:$0xff] %v425
      %458 = vst [vmem:[#allocation3 + $0x28] sm:$0xff] %v426
      %459 = vst [vmem:[#allocation3 + $0x30] sm:$0xff] %v427
      %460 = vst [vmem:[#allocation3 + $0x38] sm:$0xff] %v428
      %461 = vst [vmem:[#allocation3 + $0x40] sm:$0xff] %v429
      %462 = vst [vmem:[#allocation3 + $0x48] sm:$0xff] %v430
      %463 = vst [vmem:[#allocation3 + $0x50] sm:$0xff] %v431
      %464 = vst [vmem:[#allocation3 + $0x58] sm:$0xff] %v432
      %465 = vst [vmem:[#allocation3 + $0x60] sm:$0xff] %v433
      %466 = vst [vmem:[#allocation3 + $0x68] sm:$0xff] %v434
      %467 = vst [vmem:[#allocation3 + $0x70] sm:$0xff] %v435
      %468 = vst [vmem:[#allocation3 + $0x78] sm:$0xff] %v436
      %469 = vst [vmem:[#allocation3 + $0x80] sm:$0xff] %v437
      %470 = vst [vmem:[#allocation3 + $0x88] sm:$0xff] %v438
      %471 = vst [vmem:[#allocation3 + $0x90] sm:$0xff] %v439
      %472 = vst [vmem:[#allocation3 + $0x98] sm:$0xff] %v440
      %473 = vst [vmem:[#allocation3 + $0xa0] sm:$0xff] %v441
      %474 = vst [vmem:[#allocation3 + $0xa8] sm:$0xff] %v442
      %475 = vst [vmem:[#allocation3 + $0xb0] sm:$0xff] %v443
      %476 = vst [vmem:[#allocation3 + $0xb8] sm:$0xff] %v444
      %477 = vst [vmem:[#allocation3 + $0xc0] sm:$0xff] %v445
      %478 = vst [vmem:[#allocation3 + $0xc8] sm:$0xff] %v446
      %479 = vst [vmem:[#allocation3 + $0xd0] sm:$0xff] %v447
      %480 = vst [vmem:[#allocation3 + $0xd8] sm:$0xff] %v448
      %481 = vst [vmem:[#allocation3 + $0xe0] sm:$0xff] %v449
      %482 = vst [vmem:[#allocation3 + $0xe8] sm:$0xff] %v450
      %483 = vst [vmem:[#allocation3 + $0xf0] sm:$0xff] %v451
      %484 = vst [vmem:[#allocation3 + $0xf8] sm:$0xff] %v452
    $region17: #{directed_hyper_conv_layer.3} parent=1 // pred_fallthru
      _
    // Predicated region
    $region18: #{directed_hyper_conv_layer.3} parent=1 // pred_check
      _
    $region19: #{directed_hyper_conv_layer.3} parent=1 // pred_check_branch
      %486 = sbr.rel (0) target = $region21
    $region20: #{directed_hyper_conv_layer.3} parent=1 // pred_region
      %s488 = ssub.s32 4096, 4096
      %489 = vsyncadd [#allocation4], %s488
      %s490 = sshll.u32 [#allocation3], 4
      %s491 = int_to_ptr.vmem [resolvable:$true] %s490
      %496 = dma.vmem_to_hbm [thread:$0]  %s491, 4096, %s2, [#allocation4], 128, 128, 8
    $region21: #{directed_hyper_conv_layer.3} parent=1 // pred_fallthru
      _
    // Predicated region
    $region22: #{directed_hyper_conv_layer.3} parent=1 // pred_check
      _
    $region23: #{directed_hyper_conv_layer.3} parent=1 // pred_check_branch
      %498 = sbr.rel (0) target = $region25
    $region24: #{directed_hyper_conv_layer.3} parent=1 // pred_region
      %499 = dma.done [#allocation4], 4096
    $region25: #{directed_hyper_conv_layer.3} parent=1 // pred_fallthru
      _
    %500 = vsyncpa [#allocation4], 1

</llo_original>
